<compile_context>
chip_gen: v7x
topology: tpu7x:2x2x1
jax: 0.10.0
libtpu: 0.0.40
codegen_flags: <defaults>
</compile_context>

<pallas_src>
import math

import jax
import jax.numpy as jnp
from jax.experimental import pallas as pl
from jax.experimental.pallas import tpu as pltpu


def _round_up(a, b):
    return ((a + b - 1) // b) * b


def _choose_tiling(n):
    """Pick (padded N, row-tile TM) so the streamed (TM, Np) S tiles stay small."""
    if n <= 256:
        np_ = _round_up(max(n, 8), 8)
        return np_, np_
    for tm in (512, 256, 128, 64, 32, 16, 8):
        np_ = _round_up(n, tm)
        # two double-buffered f32 (tm, np_) S tiles must stay under ~32 MiB
        if 2 * 2 * tm * np_ * 4 <= (32 << 20):
            return np_, tm
    return _round_up(n, 8), 8


def _make_lsigf_kernel(K, TM, inv_n):
    """Horner-form LSIGF. w_ref streams the taps already reversed: block h = W_{K-1-h}."""

    def kernel(x_ref, s_ref, w_ref, o_ref, ua_ref, ub_ref):
        h = pl.program_id(0)                     # Horner level; tap = K-1-h
        i = pl.program_id(1)                     # row-block index
        row0 = pl.multiple_of(i * TM, TM)

        # Per-tap input matmul: x[rows] @ W_{K-1-h}  (Fin-deep, tiny).
        xw = jnp.dot(x_ref[...], w_ref[0], preferred_element_type=jnp.float32)

        @pl.when(h == 0)
        def _():
            ua_ref[pl.ds(row0, TM), :] = xw
            o_ref[...] = xw                      # final answer iff K == 1

        if K > 1:
            @pl.when(h > 0)
            def _():
                parity = h % 2

                def hop(prev_ref, nxt_ref):
                    # v_t[rows] = x[rows] @ W_t + (1/N) * S[rows, :] @ v_{t+1}
                    val = xw + inv_n * jnp.dot(
                        s_ref[...], prev_ref[...],
                        preferred_element_type=jnp.float32)
                    nxt_ref[pl.ds(row0, TM), :] = val
                    o_ref[...] = val             # last visit (h == K-1) wins

                @pl.when(parity == 1)            # odd level:  ua -> ub
                def _():
                    hop(ua_ref, ub_ref)

                @pl.when(parity == 0)            # even level (>0): ub -> ua
                def _():
                    hop(ub_ref, ua_ref)

    return kernel


def _lsigf_pallas(x_p, s_p, w_rev, *, K, TM, inv_n):
    Np, Finp = x_p.shape
    Foutp = w_rev.shape[-1]
    grid = (K, Np // TM)

    # Explicit VMEM budget (f32): streamed tiles are double-buffered,
    # the Horner carry scratch is not.
    need_bytes = 4 * (
        2 * TM * Np              # S row tiles
        + 2 * TM * Finp          # x row tiles
        + 2 * Finp * Foutp       # streamed weight tap
        + 2 * TM * Foutp         # output tiles
        + 2 * Np * Foutp         # ping-pong Horner carry scratch
    )
    vmem_limit = int(min(max(need_bytes * 1.25 + (4 << 20), 16 << 20), 64 << 20))

    return pl.pallas_call(
        _make_lsigf_kernel(K, TM, inv_n),
        out_shape=jax.ShapeDtypeStruct((Np, Foutp), jnp.float32),
        grid_spec=pltpu.PrefetchScalarGridSpec(
            num_scalar_prefetch=0,
            grid=grid,
            in_specs=[
                pl.BlockSpec((TM, Finp), lambda h, i: (i, 0)),          # x rows
                pl.BlockSpec((TM, Np), lambda h, i: (i, 0)),            # S rows
                # tap block index depends only on h -> only K weight DMAs total
                pl.BlockSpec((1, Finp, Foutp), lambda h, i: (h, 0, 0)),
            ],
            out_specs=pl.BlockSpec((TM, Foutp), lambda h, i: (i, 0)),
            scratch_shapes=[
                pltpu.VMEM((Np, Foutp), jnp.float32),   # Horner carry (ping)
                pltpu.VMEM((Np, Foutp), jnp.float32),   # Horner carry (pong)
            ],
        ),
        compiler_params=pltpu.CompilerParams(
            # Horner levels are a sequential dependency; row blocks share the
            # resident carry scratch, so both axes stay "arbitrary".
            # TODO(synk): on v7x, shard the row axis across the 2 TensorCores
            # (core_map + VMEM_SHARED carry + per-level core barrier) for ~2x.
            dimension_semantics=("arbitrary", "arbitrary"),
            vmem_limit_bytes=vmem_limit,
        ),
    )(x_p, s_p, w_rev)


def graph_filter_forward(x, edge_index, edge_weight, weights, normalize=True):
    """x: (N, Fin); edge_index: (2, E) int; edge_weight: (E,) or None;
    weights: (K, Fin, Fout).  Returns (N, Fout) float32."""
    N, Fin = x.shape
    K, _, Fout = weights.shape
    E = edge_index.shape[1]
    if edge_weight is None:
        edge_weight = jnp.ones((E,), dtype=jnp.float32)

    Np, TM = _choose_tiling(N)
    Finp = _round_up(Fin, 128)
    Foutp = _round_up(Fout, 128)

    # Dense S from COO (duplicate indices summed, matching sparse_coo_tensor).
    # Padded rows/cols are zero, so padded node rows stay exactly zero.
    # TODO(synk): for very large sparse graphs (E << N^2) the O(N^2)
    # densification itself is the limiter; a gather-based SpMM kernel would be
    # needed instead of dense S@v.
    s_p = jnp.zeros((Np, Np), jnp.float32).at[
        edge_index[0], edge_index[1]
    ].add(edge_weight.astype(jnp.float32))
    # NOTE: the 1/N normalization is folded into the kernel (inv_n below),
    # saving a full read+write HBM pass over S.

    x_p = jnp.zeros((Np, Finp), jnp.float32).at[:N, :Fin].set(
        x.astype(jnp.float32))
    w_p = jnp.zeros((K, Finp, Foutp), jnp.float32).at[:, :Fin, :Fout].set(
        weights.astype(jnp.float32))
    w_rev = w_p[::-1]          # Horner order: tap K-1 first

    inv_n = (1.0 / float(N)) if normalize else 1.0
    y_p = _lsigf_pallas(x_p, s_p, w_rev, K=K, TM=TM, inv_n=inv_n)
    return y_p[:N, :Fout]


def _reference_forward(x, edge_index, edge_weight, weights, normalize=True):
    """Pure-JAX mirror of the PyTorch GraphFilter forward (f32, HIGHEST precision)."""
    N = x.shape[0]
    S = jnp.zeros((N, N), jnp.float32).at[
        edge_index[0], edge_index[1]
    ].add(edge_weight)
    if normalize:
        S = S / N
    K = weights.shape[0]
    hp = jax.lax.Precision.HIGHEST
    z = x
    y = jnp.dot(z, weights[0], precision=hp)
    for k in range(1, K):
        z = jnp.dot(S, z, precision=hp)
        y = y + jnp.dot(z, weights[k], precision=hp)
    return y


if __name__ == "__main__":
    key = jax.random.PRNGKey(0)

    # Small, module-consistent shapes.
    N, Fin, Fout, K = 32, 16, 8, 3
    E = 96

    k_x, k_src, k_dst, k_ew, k_w = jax.random.split(key, 5)

    x = jax.random.normal(k_x, (N, Fin), dtype=jnp.float32)
    edge_index = jnp.stack(
        [
            jax.random.randint(k_src, (E,), 0, N),
            jax.random.randint(k_dst, (E,), 0, N),
        ],
        axis=0,
    )
    edge_weight = jax.random.uniform(k_ew, (E,), dtype=jnp.float32)

    # Parameter init mirrors reset_parameters: U(-stdv, stdv), stdv = 1/sqrt(Fin*K).
    stdv = 1.0 / math.sqrt(Fin * K)
    weights = jax.random.uniform(
        k_w, (K, Fin, Fout), minval=-stdv, maxval=stdv, dtype=jnp.float32
    )

    y = graph_filter_forward(x, edge_index, edge_weight, weights, normalize=True)
    y = jax.block_until_ready(y)

    y_ref = _reference_forward(x, edge_index, edge_weight, weights, normalize=True)
    assert y.shape == (N, Fout)
    assert jnp.allclose(y, y_ref, atol=1e-4, rtol=1e-4), "mismatch vs reference"

    print("KERNEL_OK")
</pallas_src>

<mosaic_0001>
module attributes {stable_mosaic.version = 11 : i64} {
  func.func @kernel(%arg0: i32, %arg1: i32, %arg2: memref<32x128xf32, #tpu.memory_space<vmem>>, %arg3: memref<32x32xf32, #tpu.memory_space<vmem>>, %arg4: memref<1x128x128xf32, #tpu.memory_space<vmem>>, %arg5: memref<32x128xf32, #tpu.memory_space<vmem>>, %arg6: memref<32x128xf32, #tpu.memory_space<vmem>>, %arg7: memref<32x128xf32, #tpu.memory_space<vmem>>) attributes {dimension_semantics = [#tpu.dimension_semantics<arbitrary>, #tpu.dimension_semantics<arbitrary>], iteration_bounds = array<i64: 3, 1>, scalar_prefetch = 0 : i64, scratch_operands = 2 : i64, tpu.core_type = #tpu.core_type<tc>, window_params = [{transform_indices = @transform_0, window_bounds = array<i64: 32, 128>}, {transform_indices = @transform_1, window_bounds = array<i64: 32, 32>}, {transform_indices = @transform_2, window_bounds = array<i64: 1, 128, 128>}, {transform_indices = @transform_3, window_bounds = array<i64: 32, 128>}]} {
    %c32_i32 = arith.constant 32 : i32
    %0 = arith.muli %arg1, %c32_i32 : i32
    %1 = tpu.assume_multiple %0, 32 : i32
    %c0 = arith.constant 0 : index
    %c0_0 = arith.constant 0 : index
    %2 = vector.load %arg2[%c0, %c0_0] : memref<32x128xf32, #tpu.memory_space<vmem>>, vector<32x128xf32>
    %c0_1 = arith.constant 0 : index
    %c0_2 = arith.constant 0 : index
    %c0_3 = arith.constant 0 : index
    %3 = vector.load %arg4[%c0_1, %c0_2, %c0_3] : memref<1x128x128xf32, #tpu.memory_space<vmem>>, vector<1x128x128xf32>
    %4 = vector.shape_cast %3 : vector<1x128x128xf32> to vector<128x128xf32>
    %cst = arith.constant dense<0.000000e+00> : vector<32x128xf32>
    %5 = tpu.matmul %2, %4, %cst {dimension_numbers = #tpu.dot_dimension_numbers<[1], [0], [0], [1], [0, 0, 1, 1], [], []>} : vector<32x128xf32>, vector<128x128xf32>, vector<32x128xf32> -> vector<32x128xf32>
    %c0_i32 = arith.constant 0 : i32
    %6 = arith.cmpi eq, %arg0, %c0_i32 : i32
    %7 = arith.extui %6 : i1 to i32
    %c0_i32_4 = arith.constant 0 : i32
    %8 = arith.cmpi ne, %7, %c0_i32_4 : i32
    scf.if %8 {
      %12 = arith.index_cast %1 : i32 to index
      %c0_7 = arith.constant 0 : index
      %13 = vector.load %arg6[%12, %c0_7] : memref<32x128xf32, #tpu.memory_space<vmem>>, vector<32x128xf32>
      tpu.vector_store %arg6[%12, %c0_7], %5 {strides = array<i32>} : memref<32x128xf32, #tpu.memory_space<vmem>>, vector<32x128xf32>,
      %c0_8 = arith.constant 0 : index
      %c0_9 = arith.constant 0 : index
      %14 = vector.load %arg5[%c0_8, %c0_9] : memref<32x128xf32, #tpu.memory_space<vmem>>, vector<32x128xf32>
      tpu.vector_store %arg5[%c0_8, %c0_9], %5 {strides = array<i32>} : memref<32x128xf32, #tpu.memory_space<vmem>>, vector<32x128xf32>,
    } else {
    }
    %c0_i32_5 = arith.constant 0 : i32
    %9 = arith.cmpi sgt, %arg0, %c0_i32_5 : i32
    %10 = arith.extui %9 : i1 to i32
    %c0_i32_6 = arith.constant 0 : i32
    %11 = arith.cmpi ne, %10, %c0_i32_6 : i32
    scf.if %11 {
      %c2_i32 = arith.constant 2 : i32
      %c0_i32_7 = arith.constant 0 : i32
      %12 = arith.cmpi eq, %c2_i32, %c0_i32_7 : i32
      %c1_i32 = arith.constant 1 : i32
      %13 = arith.select %12, %c1_i32, %c2_i32 : i32
      %14 = arith.remsi %arg0, %13 : i32
      %c0_i32_8 = arith.constant 0 : i32
      %15 = arith.cmpi ne, %14, %c0_i32_8 : i32
      %c0_i32_9 = arith.constant 0 : i32
      %16 = arith.cmpi slt, %14, %c0_i32_9 : i32
      %c0_i32_10 = arith.constant 0 : i32
      %17 = arith.cmpi slt, %13, %c0_i32_10 : i32
      %18 = arith.xori %16, %17 : i1
      %19 = arith.andi %18, %15 : i1
      %20 = arith.addi %14, %13 : i32
      %21 = arith.select %19, %20, %14 : i32
      %c1_i32_11 = arith.constant 1 : i32
      %22 = arith.cmpi eq, %21, %c1_i32_11 : i32
      %23 = arith.extui %22 : i1 to i32
      %c0_i32_12 = arith.constant 0 : i32
      %24 = arith.cmpi ne, %23, %c0_i32_12 : i32
      scf.if %24 {
        %c0_15 = arith.constant 0 : index
        %c0_16 = arith.constant 0 : index
        %28 = vector.load %arg3[%c0_15, %c0_16] : memref<32x32xf32, #tpu.memory_space<vmem>>, vector<32x32xf32>
        %c0_17 = arith.constant 0 : index
        %c0_18 = arith.constant 0 : index
        %29 = vector.load %arg6[%c0_17, %c0_18] : memref<32x128xf32, #tpu.memory_space<vmem>>, vector<32x128xf32>
        %cst_19 = arith.constant dense<0.000000e+00> : vector<32x128xf32>
        %30 = tpu.matmul %28, %29, %cst_19 {dimension_numbers = #tpu.dot_dimension_numbers<[1], [0], [0], [1], [0, 0, 1, 1], [], []>} : vector<32x32xf32>, vector<32x128xf32>, vector<32x128xf32> -> vector<32x128xf32>
        %cst_20 = arith.constant 3.125000e-02 : f32
        %31 = vector.broadcast %cst_20 : f32 to vector<32x128xf32>
        %32 = arith.mulf %31, %30 : vector<32x128xf32>
        %33 = arith.addf %5, %32 : vector<32x128xf32>
        %34 = arith.index_cast %1 : i32 to index
        %c0_21 = arith.constant 0 : index
        %35 = vector.load %arg7[%34, %c0_21] : memref<32x128xf32, #tpu.memory_space<vmem>>, vector<32x128xf32>
        tpu.vector_store %arg7[%34, %c0_21], %33 {strides = array<i32>} : memref<32x128xf32, #tpu.memory_space<vmem>>, vector<32x128xf32>,
        %c0_22 = arith.constant 0 : index
        %c0_23 = arith.constant 0 : index
        %36 = vector.load %arg5[%c0_22, %c0_23] : memref<32x128xf32, #tpu.memory_space<vmem>>, vector<32x128xf32>
        tpu.vector_store %arg5[%c0_22, %c0_23], %33 {strides = array<i32>} : memref<32x128xf32, #tpu.memory_space<vmem>>, vector<32x128xf32>,
      } else {
      }
      %c0_i32_13 = arith.constant 0 : i32
      %25 = arith.cmpi eq, %21, %c0_i32_13 : i32
      %26 = arith.extui %25 : i1 to i32
      %c0_i32_14 = arith.constant 0 : i32
      %27 = arith.cmpi ne, %26, %c0_i32_14 : i32
      scf.if %27 {
        %c0_15 = arith.constant 0 : index
        %c0_16 = arith.constant 0 : index
        %28 = vector.load %arg3[%c0_15, %c0_16] : memref<32x32xf32, #tpu.memory_space<vmem>>, vector<32x32xf32>
        %c0_17 = arith.constant 0 : index
        %c0_18 = arith.constant 0 : index
        %29 = vector.load %arg7[%c0_17, %c0_18] : memref<32x128xf32, #tpu.memory_space<vmem>>, vector<32x128xf32>
        %cst_19 = arith.constant dense<0.000000e+00> : vector<32x128xf32>
        %30 = tpu.matmul %28, %29, %cst_19 {dimension_numbers = #tpu.dot_dimension_numbers<[1], [0], [0], [1], [0, 0, 1, 1], [], []>} : vector<32x32xf32>, vector<32x128xf32>, vector<32x128xf32> -> vector<32x128xf32>
        %cst_20 = arith.constant 3.125000e-02 : f32
        %31 = vector.broadcast %cst_20 : f32 to vector<32x128xf32>
        %32 = arith.mulf %31, %30 : vector<32x128xf32>
        %33 = arith.addf %5, %32 : vector<32x128xf32>
        %34 = arith.index_cast %1 : i32 to index
        %c0_21 = arith.constant 0 : index
        %35 = vector.load %arg6[%34, %c0_21] : memref<32x128xf32, #tpu.memory_space<vmem>>, vector<32x128xf32>
        tpu.vector_store %arg6[%34, %c0_21], %33 {strides = array<i32>} : memref<32x128xf32, #tpu.memory_space<vmem>>, vector<32x128xf32>,
        %c0_22 = arith.constant 0 : index
        %c0_23 = arith.constant 0 : index
        %36 = vector.load %arg5[%c0_22, %c0_23] : memref<32x128xf32, #tpu.memory_space<vmem>>, vector<32x128xf32>
        tpu.vector_store %arg5[%c0_22, %c0_23], %33 {strides = array<i32>} : memref<32x128xf32, #tpu.memory_space<vmem>>, vector<32x128xf32>,
      } else {
      }
    } else {
    }
    return
  }
  func.func @transform_0(%arg0: i32, %arg1: i32) -> (i32, i32) {
    %c0_i32 = arith.constant 0 : i32
    %c0_i32_0 = arith.constant 0 : i32
    return %arg1, %c0_i32 : i32, i32
  }
  func.func @transform_1(%arg0: i32, %arg1: i32) -> (i32, i32) {
    %c0_i32 = arith.constant 0 : i32
    %c0_i32_0 = arith.constant 0 : i32
    return %arg1, %c0_i32 : i32, i32
  }
  func.func @transform_2(%arg0: i32, %arg1: i32) -> (i32, i32, i32) {
    %c0_i32 = arith.constant 0 : i32
    %c0_i32_0 = arith.constant 0 : i32
    %c0_i32_1 = arith.constant 0 : i32
    return %arg0, %c0_i32, %c0_i32_0 : i32, i32, i32
  }
  func.func @transform_3(%arg0: i32, %arg1: i32) -> (i32, i32) {
    %c0_i32 = arith.constant 0 : i32
    %c0_i32_0 = arith.constant 0 : i32
    return %arg1, %c0_i32 : i32, i32
  }
}

</mosaic_0001>

<llo_original>
// kernel: tpu_custom_call.1
$region0: #{tpu_custom_call.1}
  #allocation0 [shape = 'u32[]', space=smem, size = 0x4, offset = 0x4, fixed_abs, tag = 'smem constant byte address 0x4 - core index']
  #allocation1 [shape = 'u32[144,128]{1,0:T(1,128)}', space=vmem, size = 0x12000, scoped, tag = 'internal scratch']
  #allocation2 [shape = 'f32[32,128]{1,0:T(8,128)}', space=vmem, size = 0x4000, scoped, tag = 'scratch operand']
  #allocation3 [shape = 'f32[32,128]{1,0:T(8,128)}', space=vmem, size = 0x4000, scoped, tag = 'scratch operand']
  %s0 = inlined_call_operand.hbm [shape: f32[32,128], index: 0, kind: input, shape index: {}]
  %s1 = inlined_call_operand.hbm [shape: f32[32,32], index: 1, kind: input, shape index: {}]
  %s2 = inlined_call_operand.hbm [shape: f32[3,128,128], index: 2, kind: input, shape index: {}]
  %s3 = inlined_call_operand.hbm [shape: f32[32,128], index: 3, kind: output, shape index: {}]
  %s4 = sld [smem:[#allocation0]]
  $region73: #{tpu_custom_call.1} parent=0
    _
  %s6 = ssub.s32 1, %s4
  %s7 = scalar_select 0, %s6, %s4
  $region1: #{tpu_custom_call.1} parent=0
    #allocation4 [shape = 'u8[16384]{0}', space=vmem, size = 0x4000, scoped, tag = 'input window, operand 0, single buffered']
    #allocation5 [shape = 's32[2]{0}', space=sflag, size = 0x8, scoped, tag = 'scoped memory for tpu_custom_call.1']
    #allocation6 [shape = 's32[2]{0}', space=sflag, size = 0x8, scoped, tag = 'scoped memory for tpu_custom_call.1']
    #allocation7 [shape = 'u8[16384]{0}', space=vmem, size = 0x4000, scoped, tag = 'input window, operand 1, single buffered']
    #allocation8 [shape = 's32[1]{0}', space=sflag, size = 0x4, scoped, tag = 'scoped memory for tpu_custom_call.1']
    #allocation9 [shape = 'u8[131072]{0}', space=vmem, size = 0x20000, scoped, tag = 'input window, operand 2']
    #allocation10 [shape = 'u8[16384]{0}', space=vmem, size = 0x4000, scoped, tag = 'output window, operand 0, single buffered']
    %8 = vsyncpa [#allocation5], 0
    %9 = vsyncpa [#allocation8], 0
    %10 = vsyncpa [#allocation6], 0
    loop: start=0, step=1, limit=5
    $region2: #{tpu_custom_call.1} parent=1 // loop_pre_header
      _
    $region3: #{tpu_custom_call.1} parent=1 // loop_header
      %s12 = sphi 0, %s16
      %p13 = scmp.ge.s32.totalorder %s12, 5
      %s19 = sphi 0, %s31
      %s20 = sphi 0, %s27
      %s21 = sphi 0, %s19
      %s22 = sphi 0, %s20
      %s23 = sphi 0, %s21
      %s24 = sphi 0, %s22
      %s34 = sphi 0, %s36
      %s37 = sphi 0, %s34
      %s38 = sphi 0, %s37
      %s54 = sphi 0, %s38
      %s60 = sphi 0, %s62
      %s63 = sphi 0, %s60
      %s64 = sphi 0, %s63
      %s80 = sphi 0, %s64
      %s86 = sphi 0, %s88
      %s89 = sphi 0, %s86
      %s90 = sphi 0, %s89
      %s106 = sphi 0, %s90
      %s112 = sphi 0, %s114
      %s115 = sphi 0, %s112
      %s116 = sphi 0, %s115
      %s132 = sphi 0, %s116
    $region4: #{tpu_custom_call.1} parent=1 // loop_header_branch
      %15 = sbr.rel (%p13) target = $region8
    $region5: #{tpu_custom_call.1} parent=1 // loop_body
      %s17 = ssub.s32 %s12, 1
      %s18 = ssub.s32 %s12, 2
      %s25 = sadd.s32 1, %s20
      %p26 = scmp.ge.s32.totalorder %s25, 1
      %s27 = scalar_select %p26, 0, %s25
      %s28 = sadd.s32 1, %s19
      %s29 = scalar_select %p26, %s28, %s19
      %p30 = scmp.ge.s32.totalorder %s29, 3
      %s31 = scalar_select %p30, 0, %s29
      %s32 = ssub.s32 %s20, %s27
      %p33 = scmp.eq.s32.totalorder %s32, 0
      %s35 = sadd.s32 %s34, 1
      %s36 = scalar_select %p33, %s34, %s35
      %p39 = pneg %p33
      %p40 = scmp.eq.s32.totalorder %s12, 2
      %p41 = por %p39, %p40
      %p42 = scmp.ne.s32.totalorder %s34, %s37
      %p43 = scmp.eq.s32.totalorder %s12, 0
      %p44 = por %p42, %p43
      %p45 = scmp.ne.s32.totalorder %s34, %s37
      %p46 = scmp.eq.s32.totalorder %s17, 2
      %p47 = por %p45, %p46
      %p48 = scmp.ne.s32.totalorder %s37, %s38
      %p49 = scmp.eq.s32.totalorder %s17, 0
      %p50 = por %p48, %p49
      %p51 = scmp.ne.s32.totalorder %s37, %s38
      %p52 = scmp.eq.s32.totalorder %s18, 2
      %p53 = por %p51, %p52
      %p55 = scmp.ne.s32.totalorder %s38, %s54
      %p56 = scmp.eq.s32.totalorder %s18, 0
      %p57 = por %p55, %p56
      %s58 = ssub.s32 %s20, %s27
      %p59 = scmp.eq.s32.totalorder %s58, 0
      %s61 = sadd.s32 %s60, 1
      %s62 = scalar_select %p59, %s60, %s61
      %p65 = pneg %p59
      %p66 = scmp.eq.s32.totalorder %s12, 2
      %p67 = por %p65, %p66
      %p68 = scmp.ne.s32.totalorder %s60, %s63
      %p69 = scmp.eq.s32.totalorder %s12, 0
      %p70 = por %p68, %p69
      %p71 = scmp.ne.s32.totalorder %s60, %s63
      %p72 = scmp.eq.s32.totalorder %s17, 2
      %p73 = por %p71, %p72
      %p74 = scmp.ne.s32.totalorder %s63, %s64
      %p75 = scmp.eq.s32.totalorder %s17, 0
      %p76 = por %p74, %p75
      %p77 = scmp.ne.s32.totalorder %s63, %s64
      %p78 = scmp.eq.s32.totalorder %s18, 2
      %p79 = por %p77, %p78
      %p81 = scmp.ne.s32.totalorder %s64, %s80
      %p82 = scmp.eq.s32.totalorder %s18, 0
      %p83 = por %p81, %p82
      %s84 = ssub.s32 %s19, %s31
      %p85 = scmp.eq.s32.totalorder %s84, 0
      %s87 = sadd.s32 %s86, 1
      %s88 = scalar_select %p85, %s86, %s87
      %p91 = pneg %p85
      %p92 = scmp.eq.s32.totalorder %s12, 2
      %p93 = por %p91, %p92
      %p94 = scmp.ne.s32.totalorder %s86, %s89
      %p95 = scmp.eq.s32.totalorder %s12, 0
      %p96 = por %p94, %p95
      %p97 = scmp.ne.s32.totalorder %s86, %s89
      %p98 = scmp.eq.s32.totalorder %s17, 2
      %p99 = por %p97, %p98
      %p100 = scmp.ne.s32.totalorder %s89, %s90
      %p101 = scmp.eq.s32.totalorder %s17, 0
      %p102 = por %p100, %p101
      %p103 = scmp.ne.s32.totalorder %s89, %s90
      %p104 = scmp.eq.s32.totalorder %s18, 2
      %p105 = por %p103, %p104
      %p107 = scmp.ne.s32.totalorder %s90, %s106
      %p108 = scmp.eq.s32.totalorder %s18, 0
      %p109 = por %p107, %p108
      %s110 = ssub.s32 %s20, %s27
      %p111 = scmp.eq.s32.totalorder %s110, 0
      %s113 = sadd.s32 %s112, 1
      %s114 = scalar_select %p111, %s112, %s113
      %p117 = pneg %p111
      %p118 = scmp.eq.s32.totalorder %s12, 2
      %p119 = por %p117, %p118
      %p120 = scmp.ne.s32.totalorder %s112, %s115
      %p121 = scmp.eq.s32.totalorder %s12, 0
      %p122 = por %p120, %p121
      %p123 = scmp.ne.s32.totalorder %s112, %s115
      %p124 = scmp.eq.s32.totalorder %s17, 2
      %p125 = por %p123, %p124
      %p126 = scmp.ne.s32.totalorder %s115, %s116
      %p127 = scmp.eq.s32.totalorder %s17, 0
      %p128 = por %p126, %p127
      %p129 = scmp.ne.s32.totalorder %s115, %s116
      %p130 = scmp.eq.s32.totalorder %s18, 2
      %p131 = por %p129, %p130
      %p133 = scmp.ne.s32.totalorder %s116, %s132
      %p134 = scmp.eq.s32.totalorder %s18, 0
      %p135 = por %p133, %p134
      %p136 = scmp.le.s32.totalorder 1, %s12
      %p137 = scmp.lt.s32.totalorder %s12, 4
      %p138 = pnand %p136, %p137
      %p139 = pneg %p138
      // Predicated region
      $region9: #{tpu_custom_call.1} parent=5 // pred_check
        _
      $region10: #{tpu_custom_call.1} parent=5 // pred_check_branch
        %141 = sbr.rel (%p138) target = $region12
      $region11: #{tpu_custom_call.1} parent=5 // pred_region
        %s142 = ssub.s32 %s12, 1
        // Predicated region
        $region13: #{tpu_custom_call.1} parent=11 // pred_check
          %p143 = pneg %p50
        $region14: #{tpu_custom_call.1} parent=11 // pred_check_branch
          %145 = sbr.rel (%p143) target = $region16
        $region15: #{tpu_custom_call.1} parent=11 // pred_region
          %s146 = smul.u32 4, %s22
          %s148 = ssub.s32 512, 512
          %149 = vsyncadd [#allocation5], %s148
          %s150 = smul.addr %s146, 128
          %s151 = scalar_lea.hbm %s0, %s150
          %s152 = sshll.u32 [#allocation4], 4
          %s153 = int_to_ptr.vmem [resolvable:$true] %s152
          %158 = dma.hbm_to_vmem [thread:$0]  %s151, 512, %s153, [#allocation5], 128, 128, 8
        $region16: #{tpu_custom_call.1} parent=11 // pred_fallthru
          _
        // Predicated region
        $region17: #{tpu_custom_call.1} parent=11 // pred_check
          %p159 = pneg %p76
        $region18: #{tpu_custom_call.1} parent=11 // pred_check_branch
          %161 = sbr.rel (%p159) target = $region20
        $region19: #{tpu_custom_call.1} parent=11 // pred_region
          %s162 = smul.u32 4, %s22
          %s164 = ssub.s32 512, 512
          %165 = vsyncadd [#allocation8], %s164
          %s166 = smul.addr %s162, 128
          %s167 = scalar_lea.hbm %s1, %s166
          %s168 = sshll.u32 [#allocation7], 4
          %s169 = int_to_ptr.vmem [resolvable:$true] %s168
          %174 = dma.hbm_to_vmem [thread:$0]  %s167, 512, %s169, [#allocation8], 128, 128, 8
        $region20: #{tpu_custom_call.1} parent=11 // pred_fallthru
          _
      $region12: #{tpu_custom_call.1} parent=5 // pred_fallthru
        _
      %p175 = scmp.lt.s32.totalorder %s12, 3
      // Predicated region
      $region21: #{tpu_custom_call.1} parent=5 // pred_check
        %p176 = pneg %p175
      $region22: #{tpu_custom_call.1} parent=5 // pred_check_branch
        %178 = sbr.rel (%p176) target = $region24
      $region23: #{tpu_custom_call.1} parent=5 // pred_region
        // Predicated region
        $region25: #{tpu_custom_call.1} parent=23 // pred_check
          %p179 = pneg %p96
        $region26: #{tpu_custom_call.1} parent=23 // pred_check_branch
          %181 = sbr.rel (%p179) target = $region28
        $region27: #{tpu_custom_call.1} parent=23 // pred_region
          %s182 = sand.u32 %s12, 1
          %s183 = scalar_lea.sflag [#allocation5], %s182
          %s184 = sand.u32 %s86, 1
          %s185 = smul.addr %s184, 128
          %s186 = scalar_lea.vmem [#allocation9], %s185
          %s188 = ssub.s32 2048, 2048
          %189 = vsyncadd %s183, %s188
          %s190 = smul.addr %s19, 16
          %s191 = smul.addr %s190, 128
          %s192 = scalar_lea.hbm %s2, %s191
          %s193 = sshll.u32 %s186, 4
          %s194 = int_to_ptr.vmem [resolvable:$true] %s193
          %199 = dma.hbm_to_vmem [thread:$0]  %s192, 2048, %s194, %s183, 128, 128, 8
        $region28: #{tpu_custom_call.1} parent=23 // pred_fallthru
          _
      $region24: #{tpu_custom_call.1} parent=5 // pred_fallthru
        _
      %p200 = scmp.le.s32.totalorder 1, %s12
      %p201 = scmp.lt.s32.totalorder %s12, 4
      %p202 = pnand %p200, %p201
      %p203 = pneg %p202
      // Predicated region
      $region29: #{tpu_custom_call.1} parent=5 // pred_check
        _
      $region30: #{tpu_custom_call.1} parent=5 // pred_check_branch
        %205 = sbr.rel (%p202) target = $region32
      $region31: #{tpu_custom_call.1} parent=5 // pred_region
        %s206 = ssub.s32 %s12, 1
        // Predicated region
        $region33: #{tpu_custom_call.1} parent=31 // pred_check
          %p207 = pneg %p50
        $region34: #{tpu_custom_call.1} parent=31 // pred_check_branch
          %209 = sbr.rel (%p207) target = $region36
        $region35: #{tpu_custom_call.1} parent=31 // pred_region
          %210 = dma.done [#allocation5], 512
        $region36: #{tpu_custom_call.1} parent=31 // pred_fallthru
          _
        // Predicated region
        $region37: #{tpu_custom_call.1} parent=31 // pred_check
          %p211 = pneg %p76
        $region38: #{tpu_custom_call.1} parent=31 // pred_check_branch
          %213 = sbr.rel (%p211) target = $region40
        $region39: #{tpu_custom_call.1} parent=31 // pred_region
          %214 = dma.done [#allocation8], 512
        $region40: #{tpu_custom_call.1} parent=31 // pred_fallthru
          _
        %s215 = sand.u32 %s17, 1
        %s216 = scalar_lea.sflag [#allocation5], %s215
        %s217 = sand.u32 %s89, 1
        %s218 = smul.addr %s217, 128
        %s219 = scalar_lea.vmem [#allocation9], %s218
        // Predicated region
        $region41: #{tpu_custom_call.1} parent=31 // pred_check
          %p220 = pneg %p102
        $region42: #{tpu_custom_call.1} parent=31 // pred_check_branch
          %222 = sbr.rel (%p220) target = $region44
        $region43: #{tpu_custom_call.1} parent=31 // pred_region
          %223 = dma.done %s216, 2048
        $region44: #{tpu_custom_call.1} parent=31 // pred_fallthru
          _
        %p224 = pneg %p50
        %p225 = pneg %p47
        %p226 = pneg %p76
        %p227 = pneg %p73
        %s228 = sand.u32 %s17, 1
        %s229 = scalar_lea.sflag [#allocation5], %s228
        %s230 = sand.u32 %s89, 1
        %s231 = smul.addr %s230, 128
        %s232 = scalar_lea.vmem [#allocation9], %s231
        %p233 = pneg %p102
        %p234 = pneg %p99
        %p235 = pneg %p128
        %p236 = pneg %p125
        %s237 = smul.u32 4, %s22
        %s238 = smul.u32 4, %s22
        %s239 = smul.u32 4, %s22
        %s240 = smul.u32 %s22, 32
        %v241 = vld [vmem:[#allocation4] sm:$0xff]
        %v242 = vld [vmem:[#allocation4 + $0x8] sm:$0xff]
        %v243 = vld [vmem:[#allocation4 + $0x10] sm:$0xff]
        %v244 = vld [vmem:[#allocation4 + $0x18] sm:$0xff]
        %v245 = vld [vmem:[%s219] sm:$0xff]
        %v246 = vld [vmem:[%s219 + $0x8] sm:$0xff]
        %v247 = vld [vmem:[%s219 + $0x10] sm:$0xff]
        %v248 = vld [vmem:[%s219 + $0x18] sm:$0xff]
        %v249 = vld [vmem:[%s219 + $0x20] sm:$0xff]
        %v250 = vld [vmem:[%s219 + $0x28] sm:$0xff]
        %v251 = vld [vmem:[%s219 + $0x30] sm:$0xff]
        %v252 = vld [vmem:[%s219 + $0x38] sm:$0xff]
        %v253 = vld [vmem:[%s219 + $0x40] sm:$0xff]
        %v254 = vld [vmem:[%s219 + $0x48] sm:$0xff]
        %v255 = vld [vmem:[%s219 + $0x50] sm:$0xff]
        %v256 = vld [vmem:[%s219 + $0x58] sm:$0xff]
        %v257 = vld [vmem:[%s219 + $0x60] sm:$0xff]
        %v258 = vld [vmem:[%s219 + $0x68] sm:$0xff]
        %v259 = vld [vmem:[%s219 + $0x70] sm:$0xff]
        %v260 = vld [vmem:[%s219 + $0x78] sm:$0xff]
        %261 = vmatprep.subr.mxu0 0.0
        %262 = vmatpush1.msra.mxu0 %v245
        %263 = vmatprep.subr.mxu0 0.0
        %264 = vmatpush1.msra.mxu0 %v246
        %265 = vmatprep.subr.mxu0 0.0
        %266 = vmatpush1.msra.mxu0 %v247
        %267 = vmatprep.subr.mxu0 0.0
        %268 = vmatpush1.msra.mxu0 %v248
        %269 = vmatprep.subr.mxu0 0.0
        %270 = vmatpush1.msra.mxu0 %v249
        %271 = vmatprep.subr.mxu0 0.0
        %272 = vmatpush1.msra.mxu0 %v250
        %273 = vmatprep.subr.mxu0 0.0
        %274 = vmatpush1.msra.mxu0 %v251
        %275 = vmatprep.subr.mxu0 0.0
        %276 = vmatpush1.msra.mxu0 %v252
        %277 = vmatprep.subr.mxu0 0.0
        %278 = vmatpush1.msra.mxu0 %v253
        %279 = vmatprep.subr.mxu0 0.0
        %280 = vmatpush1.msra.mxu0 %v254
        %281 = vmatprep.subr.mxu0 0.0
        %282 = vmatpush1.msra.mxu0 %v255
        %283 = vmatprep.subr.mxu0 0.0
        %284 = vmatpush1.msra.mxu0 %v256
        %285 = vmatprep.subr.mxu0 0.0
        %286 = vmatpush1.msra.mxu0 %v257
        %287 = vmatprep.subr.mxu0 0.0
        %288 = vmatpush1.msra.mxu0 %v258
        %289 = vmatprep.subr.mxu0 0.0
        %290 = vmatpush1.msra.mxu0 %v259
        %291 = vmatprep.subr.mxu0 0.0
        %292 = vmatpush1.msra.mxu0 %v260
        %293 = vmatprep.subr.mxu0 0.0
        %294 = vmatpush1.msra.mxu0 0.0
        %295 = vmatprep.subr.mxu0 0.0
        %296 = vmatpush1.msra.mxu0 0.0
        %297 = vmatprep.subr.mxu0 0.0
        %298 = vmatpush1.msra.mxu0 0.0
        %299 = vmatprep.subr.mxu0 0.0
        %300 = vmatpush1.msra.mxu0 0.0
        %301 = vmatprep.subr.mxu0 0.0
        %302 = vmatpush1.msra.mxu0 0.0
        %303 = vmatprep.subr.mxu0 0.0
        %304 = vmatpush1.msra.mxu0 0.0
        %305 = vmatprep.subr.mxu0 0.0
        %306 = vmatpush1.msra.mxu0 0.0
        %307 = vmatprep.subr.mxu0 0.0
        %308 = vmatpush1.msra.mxu0 0.0
        %309 = vmatprep.subr.mxu0 0.0
        %310 = vmatpush1.msra.mxu0 0.0
        %311 = vmatprep.subr.mxu0 0.0
        %312 = vmatpush1.msra.mxu0 0.0
        %313 = vmatprep.subr.mxu0 0.0
        %314 = vmatpush1.msra.mxu0 0.0
        %315 = vmatprep.subr.mxu0 0.0
        %316 = vmatpush1.msra.mxu0 0.0
        %317 = vmatprep.subr.mxu0 0.0
        %318 = vmatpush1.msra.mxu0 0.0
        %319 = vmatprep.subr.mxu0 0.0
        %320 = vmatpush1.msra.mxu0 0.0
        %321 = vmatprep.subr.mxu0 0.0
        %322 = vmatpush1.msra.mxu0 0.0
        %323 = vmatprep.subr.mxu0 0.0
        %324 = vmatpush1.msra.mxu0 0.0
        %325 = vmatprep.mubr.f32.mxu0 0.0
        %326 = vmatmul.mubr.f32.gmra.mrb[0].mxu0 %v241
        %v327 = vpop.f32.mrb[0].mxu0
        %v328 = vadd.f32 0.0, %v327
        %v329 = vpop.f32.mrb[0].mxu0
        %330 = vmatprep.mubr.f32.mxu0 0.0
        %331 = vmatmul.mubr.f32.gmra.mrb[0].mxu0 %v242
        %v332 = vpop.f32.mrb[0].mxu0
        %v333 = vadd.f32 0.0, %v332
        %v334 = vpop.f32.mrb[0].mxu0
        %335 = vmatprep.mubr.f32.mxu0 0.0
        %336 = vmatmul.mubr.f32.gmra.mrb[0].mxu0 %v243
        %v337 = vpop.f32.mrb[0].mxu0
        %v338 = vadd.f32 0.0, %v337
        %v339 = vpop.f32.mrb[0].mxu0
        %340 = vmatprep.mubr.f32.mxu0 0.0
        %341 = vmatmul.mubr.f32.gmra.mrb[0].mxu0 %v244
        %v342 = vpop.f32.mrb[0].mxu0
        %v343 = vadd.f32 0.0, %v342
        %v344 = vpop.f32.mrb[0].mxu0
        %345 = vdwg.mxu0
        %p346 = scmp.eq.s32.totalorder %s21, 0
        // Predicated region
        $region45: #{tpu_custom_call.1} parent=31 // pred_check
          %p347 = pneg %p346
        $region46: #{tpu_custom_call.1} parent=31 // pred_check_branch
          %349 = sbr.rel (%p347) target = $region48
        $region47: #{tpu_custom_call.1} parent=31 // pred_region
          %s350 = scalar_lea.vmem [#allocation2], %s240
          %351 = vst [vmem:[%s350] sm:$0xff] %v328
          %352 = vst [vmem:[%s350 + $0x8] sm:$0xff] %v333
          %353 = vst [vmem:[%s350 + $0x10] sm:$0xff] %v338
          %354 = vst [vmem:[%s350 + $0x18] sm:$0xff] %v343
          %355 = vst [vmem:[#allocation10] sm:$0xff] %v328
          %356 = vst [vmem:[#allocation10 + $0x8] sm:$0xff] %v333
          %357 = vst [vmem:[#allocation10 + $0x10] sm:$0xff] %v338
          %358 = vst [vmem:[#allocation10 + $0x18] sm:$0xff] %v343
        $region48: #{tpu_custom_call.1} parent=31 // pred_fallthru
          _
        %p359 = scmp.gt.s32.totalorder %s21, 0
        // Predicated region
        $region49: #{tpu_custom_call.1} parent=31 // pred_check
          %p360 = pneg %p359
        $region50: #{tpu_custom_call.1} parent=31 // pred_check_branch
          %362 = sbr.rel (%p360) target = $region52
        $region51: #{tpu_custom_call.1} parent=31 // pred_region
          %p363 = scmp.lt.s32.totalorder %s21, 0
          %s364 = ssub.s32 0, %s21
          %s365 = scalar_select %p363, %s364, %s21
          %s366 = sand.u32 %s365, 1
          %s367 = ssub.s32 0, %s366
          %s368 = scalar_select %p363, %s367, %s366
          %p369 = scmp.ne.s32.totalorder %s368, 0
          %p370 = scmp.lt.s32.totalorder %s368, 0
          %p371 = pnand %p370, %p369
          %p372 = pneg %p371
          %s373 = sadd.s32 %s368, 2
          %s374 = scalar_select %p372, %s373, %s368
          %p375 = scmp.eq.s32.totalorder %s374, 1
          // Predicated region
          $region53: #{tpu_custom_call.1} parent=51 // pred_check
            %p376 = pneg %p375
          $region54: #{tpu_custom_call.1} parent=51 // pred_check_branch
            %378 = sbr.rel (%p376) target = $region56
          $region55: #{tpu_custom_call.1} parent=51 // pred_region
            %v379 = vld [vmem:[#allocation7] sm:$0xff]
            %v380 = vld [vmem:[#allocation7 + $0x8] sm:$0xff]
            %v381 = vld [vmem:[#allocation7 + $0x10] sm:$0xff]
            %v382 = vld [vmem:[#allocation7 + $0x18] sm:$0xff]
            %v383 = vld [vmem:[#allocation2] sm:$0xff]
            %v384 = vld [vmem:[#allocation2 + $0x8] sm:$0xff]
            %v385 = vld [vmem:[#allocation2 + $0x10] sm:$0xff]
            %v386 = vld [vmem:[#allocation2 + $0x18] sm:$0xff]
            %vm387 = vcmask 261120
            %v389 = vsel %vm387, %v379, 0
            %v392 = vsel %vm387, %v380, 0
            %v395 = vsel %vm387, %v381, 0
            %v398 = vsel %vm387, %v382, 0
            %400 = vmatprep.subr.mxu0 0.0
            %401 = vmatpush1.msra.mxu0 %v383
            %402 = vmatprep.subr.mxu0 0.0
            %403 = vmatpush1.msra.mxu0 %v384
            %404 = vmatprep.subr.mxu0 0.0
            %405 = vmatpush1.msra.mxu0 %v385
            %406 = vmatprep.subr.mxu0 0.0
            %407 = vmatpush1.msra.mxu0 %v386
            %408 = vmatprep.subr.mxu0 0.0
            %409 = vmatpush1.msra.mxu0 0.0
            %410 = vmatprep.subr.mxu0 0.0
            %411 = vmatpush1.msra.mxu0 0.0
            %412 = vmatprep.subr.mxu0 0.0
            %413 = vmatpush1.msra.mxu0 0.0
            %414 = vmatprep.subr.mxu0 0.0
            %415 = vmatpush1.msra.mxu0 0.0
            %416 = vmatprep.subr.mxu0 0.0
            %417 = vmatpush1.msra.mxu0 0.0
            %418 = vmatprep.subr.mxu0 0.0
            %419 = vmatpush1.msra.mxu0 0.0
            %420 = vmatprep.subr.mxu0 0.0
            %421 = vmatpush1.msra.mxu0 0.0
            %422 = vmatprep.subr.mxu0 0.0
            %423 = vmatpush1.msra.mxu0 0.0
            %424 = vmatprep.subr.mxu0 0.0
            %425 = vmatpush1.msra.mxu0 0.0
            %426 = vmatprep.subr.mxu0 0.0
            %427 = vmatpush1.msra.mxu0 0.0
            %428 = vmatprep.subr.mxu0 0.0
            %429 = vmatpush1.msra.mxu0 0.0
            %430 = vmatprep.subr.mxu0 0.0
            %431 = vmatpush1.msra.mxu0 0.0
            %432 = vmatprep.subr.mxu0 0.0
            %433 = vmatpush1.msra.mxu0 0.0
            %434 = vmatprep.subr.mxu0 0.0
            %435 = vmatpush1.msra.mxu0 0.0
            %436 = vmatprep.subr.mxu0 0.0
            %437 = vmatpush1.msra.mxu0 0.0
            %438 = vmatprep.subr.mxu0 0.0
            %439 = vmatpush1.msra.mxu0 0.0
            %440 = vmatprep.subr.mxu0 0.0
            %441 = vmatpush1.msra.mxu0 0.0
            %442 = vmatprep.subr.mxu0 0.0
            %443 = vmatpush1.msra.mxu0 0.0
            %444 = vmatprep.subr.mxu0 0.0
            %445 = vmatpush1.msra.mxu0 0.0
            %446 = vmatprep.subr.mxu0 0.0
            %447 = vmatpush1.msra.mxu0 0.0
            %448 = vmatprep.subr.mxu0 0.0
            %449 = vmatpush1.msra.mxu0 0.0
            %450 = vmatprep.subr.mxu0 0.0
            %451 = vmatpush1.msra.mxu0 0.0
            %452 = vmatprep.subr.mxu0 0.0
            %453 = vmatpush1.msra.mxu0 0.0
            %454 = vmatprep.subr.mxu0 0.0
            %455 = vmatpush1.msra.mxu0 0.0
            %456 = vmatprep.subr.mxu0 0.0
            %457 = vmatpush1.msra.mxu0 0.0
            %458 = vmatprep.subr.mxu0 0.0
            %459 = vmatpush1.msra.mxu0 0.0
            %460 = vmatprep.subr.mxu0 0.0
            %461 = vmatpush1.msra.mxu0 0.0
            %462 = vmatprep.subr.mxu0 0.0
            %463 = vmatpush1.msra.mxu0 0.0
            %464 = vmatprep.mubr.f32.mxu0 0.0
            %465 = vmatmul.mubr.f32.gmra.mrb[0].mxu0 %v389
            %v466 = vpop.f32.mrb[0].mxu0
            %v467 = vadd.f32 0.0, %v466
            %v468 = vpop.f32.mrb[0].mxu0
            %469 = vmatprep.mubr.f32.mxu0 0.0
            %470 = vmatmul.mubr.f32.gmra.mrb[0].mxu0 %v392
            %v471 = vpop.f32.mrb[0].mxu0
            %v472 = vadd.f32 0.0, %v471
            %v473 = vpop.f32.mrb[0].mxu0
            %474 = vmatprep.mubr.f32.mxu0 0.0
            %475 = vmatmul.mubr.f32.gmra.mrb[0].mxu0 %v395
            %v476 = vpop.f32.mrb[0].mxu0
            %v477 = vadd.f32 0.0, %v476
            %v478 = vpop.f32.mrb[0].mxu0
            %479 = vmatprep.mubr.f32.mxu0 0.0
            %480 = vmatmul.mubr.f32.gmra.mrb[0].mxu0 %v398
            %v481 = vpop.f32.mrb[0].mxu0
            %v482 = vadd.f32 0.0, %v481
            %v483 = vpop.f32.mrb[0].mxu0
            %484 = vdwg.mxu0
            %v485 = vmul.f32 %v467, 0.03125
            %v486 = vmul.f32 %v472, 0.03125
            %v487 = vmul.f32 %v477, 0.03125
            %v488 = vmul.f32 %v482, 0.03125
            %v489 = vadd.f32 %v328, %v485
            %v490 = vadd.f32 %v333, %v486
            %v491 = vadd.f32 %v338, %v487
            %v492 = vadd.f32 %v343, %v488
            %s493 = scalar_lea.vmem [#allocation3], %s240
            %494 = vst [vmem:[%s493] sm:$0xff] %v489
            %495 = vst [vmem:[%s493 + $0x8] sm:$0xff] %v490
            %496 = vst [vmem:[%s493 + $0x10] sm:$0xff] %v491
            %497 = vst [vmem:[%s493 + $0x18] sm:$0xff] %v492
            %498 = vst [vmem:[#allocation10] sm:$0xff] %v489
            %499 = vst [vmem:[#allocation10 + $0x8] sm:$0xff] %v490
            %500 = vst [vmem:[#allocation10 + $0x10] sm:$0xff] %v491
            %501 = vst [vmem:[#allocation10 + $0x18] sm:$0xff] %v492
          $region56: #{tpu_custom_call.1} parent=51 // pred_fallthru
            _
          %p502 = scmp.eq.s32.totalorder %s374, 0
          // Predicated region
          $region57: #{tpu_custom_call.1} parent=51 // pred_check
            %p503 = pneg %p502
          $region58: #{tpu_custom_call.1} parent=51 // pred_check_branch
            %505 = sbr.rel (%p503) target = $region60
          $region59: #{tpu_custom_call.1} parent=51 // pred_region
            %v506 = vld [vmem:[#allocation7] sm:$0xff]
            %v507 = vld [vmem:[#allocation7 + $0x8] sm:$0xff]
            %v508 = vld [vmem:[#allocation7 + $0x10] sm:$0xff]
            %v509 = vld [vmem:[#allocation7 + $0x18] sm:$0xff]
            %v510 = vld [vmem:[#allocation3] sm:$0xff]
            %v511 = vld [vmem:[#allocation3 + $0x8] sm:$0xff]
            %v512 = vld [vmem:[#allocation3 + $0x10] sm:$0xff]
            %v513 = vld [vmem:[#allocation3 + $0x18] sm:$0xff]
            %vm514 = vcmask 261120
            %v516 = vsel %vm514, %v506, 0
            %v519 = vsel %vm514, %v507, 0
            %v522 = vsel %vm514, %v508, 0
            %v525 = vsel %vm514, %v509, 0
            %527 = vmatprep.subr.mxu0 0.0
            %528 = vmatpush1.msra.mxu0 %v510
            %529 = vmatprep.subr.mxu0 0.0
            %530 = vmatpush1.msra.mxu0 %v511
            %531 = vmatprep.subr.mxu0 0.0
            %532 = vmatpush1.msra.mxu0 %v512
            %533 = vmatprep.subr.mxu0 0.0
            %534 = vmatpush1.msra.mxu0 %v513
            %535 = vmatprep.subr.mxu0 0.0
            %536 = vmatpush1.msra.mxu0 0.0
            %537 = vmatprep.subr.mxu0 0.0
            %538 = vmatpush1.msra.mxu0 0.0
            %539 = vmatprep.subr.mxu0 0.0
            %540 = vmatpush1.msra.mxu0 0.0
            %541 = vmatprep.subr.mxu0 0.0
            %542 = vmatpush1.msra.mxu0 0.0
            %543 = vmatprep.subr.mxu0 0.0
            %544 = vmatpush1.msra.mxu0 0.0
            %545 = vmatprep.subr.mxu0 0.0
            %546 = vmatpush1.msra.mxu0 0.0
            %547 = vmatprep.subr.mxu0 0.0
            %548 = vmatpush1.msra.mxu0 0.0
            %549 = vmatprep.subr.mxu0 0.0
            %550 = vmatpush1.msra.mxu0 0.0
            %551 = vmatprep.subr.mxu0 0.0
            %552 = vmatpush1.msra.mxu0 0.0
            %553 = vmatprep.subr.mxu0 0.0
            %554 = vmatpush1.msra.mxu0 0.0
            %555 = vmatprep.subr.mxu0 0.0
            %556 = vmatpush1.msra.mxu0 0.0
            %557 = vmatprep.subr.mxu0 0.0
            %558 = vmatpush1.msra.mxu0 0.0
            %559 = vmatprep.subr.mxu0 0.0
            %560 = vmatpush1.msra.mxu0 0.0
            %561 = vmatprep.subr.mxu0 0.0
            %562 = vmatpush1.msra.mxu0 0.0
            %563 = vmatprep.subr.mxu0 0.0
            %564 = vmatpush1.msra.mxu0 0.0
            %565 = vmatprep.subr.mxu0 0.0
            %566 = vmatpush1.msra.mxu0 0.0
            %567 = vmatprep.subr.mxu0 0.0
            %568 = vmatpush1.msra.mxu0 0.0
            %569 = vmatprep.subr.mxu0 0.0
            %570 = vmatpush1.msra.mxu0 0.0
            %571 = vmatprep.subr.mxu0 0.0
            %572 = vmatpush1.msra.mxu0 0.0
            %573 = vmatprep.subr.mxu0 0.0
            %574 = vmatpush1.msra.mxu0 0.0
            %575 = vmatprep.subr.mxu0 0.0
            %576 = vmatpush1.msra.mxu0 0.0
            %577 = vmatprep.subr.mxu0 0.0
            %578 = vmatpush1.msra.mxu0 0.0
            %579 = vmatprep.subr.mxu0 0.0
            %580 = vmatpush1.msra.mxu0 0.0
            %581 = vmatprep.subr.mxu0 0.0
            %582 = vmatpush1.msra.mxu0 0.0
            %583 = vmatprep.subr.mxu0 0.0
            %584 = vmatpush1.msra.mxu0 0.0
            %585 = vmatprep.subr.mxu0 0.0
            %586 = vmatpush1.msra.mxu0 0.0
            %587 = vmatprep.subr.mxu0 0.0
            %588 = vmatpush1.msra.mxu0 0.0
            %589 = vmatprep.subr.mxu0 0.0
            %590 = vmatpush1.msra.mxu0 0.0
            %591 = vmatprep.mubr.f32.mxu0 0.0
            %592 = vmatmul.mubr.f32.gmra.mrb[0].mxu0 %v516
            %v593 = vpop.f32.mrb[0].mxu0
            %v594 = vadd.f32 0.0, %v593
            %v595 = vpop.f32.mrb[0].mxu0
            %596 = vmatprep.mubr.f32.mxu0 0.0
            %597 = vmatmul.mubr.f32.gmra.mrb[0].mxu0 %v519
            %v598 = vpop.f32.mrb[0].mxu0
            %v599 = vadd.f32 0.0, %v598
            %v600 = vpop.f32.mrb[0].mxu0
            %601 = vmatprep.mubr.f32.mxu0 0.0
            %602 = vmatmul.mubr.f32.gmra.mrb[0].mxu0 %v522
            %v603 = vpop.f32.mrb[0].mxu0
            %v604 = vadd.f32 0.0, %v603
            %v605 = vpop.f32.mrb[0].mxu0
            %606 = vmatprep.mubr.f32.mxu0 0.0
            %607 = vmatmul.mubr.f32.gmra.mrb[0].mxu0 %v525
            %v608 = vpop.f32.mrb[0].mxu0
            %v609 = vadd.f32 0.0, %v608
            %v610 = vpop.f32.mrb[0].mxu0
            %611 = vdwg.mxu0
            %v612 = vmul.f32 %v594, 0.03125
            %v613 = vmul.f32 %v599, 0.03125
            %v614 = vmul.f32 %v604, 0.03125
            %v615 = vmul.f32 %v609, 0.03125
            %v616 = vadd.f32 %v328, %v612
            %v617 = vadd.f32 %v333, %v613
            %v618 = vadd.f32 %v338, %v614
            %v619 = vadd.f32 %v343, %v615
            %s620 = scalar_lea.vmem [#allocation2], %s240
            %621 = vst [vmem:[%s620] sm:$0xff] %v616
            %622 = vst [vmem:[%s620 + $0x8] sm:$0xff] %v617
            %623 = vst [vmem:[%s620 + $0x10] sm:$0xff] %v618
            %624 = vst [vmem:[%s620 + $0x18] sm:$0xff] %v619
            %625 = vst [vmem:[#allocation10] sm:$0xff] %v616
            %626 = vst [vmem:[#allocation10 + $0x8] sm:$0xff] %v617
            %627 = vst [vmem:[#allocation10 + $0x10] sm:$0xff] %v618
            %628 = vst [vmem:[#allocation10 + $0x18] sm:$0xff] %v619
          $region60: #{tpu_custom_call.1} parent=51 // pred_fallthru
            _
        $region52: #{tpu_custom_call.1} parent=31 // pred_fallthru
          _
        // Predicated region
        $region61: #{tpu_custom_call.1} parent=31 // pred_check
          %p629 = pneg %p125
        $region62: #{tpu_custom_call.1} parent=31 // pred_check_branch
          %631 = sbr.rel (%p629) target = $region64
        $region63: #{tpu_custom_call.1} parent=31 // pred_region
          %s632 = smul.u32 4, %s22
          %s634 = ssub.s32 512, 512
          %635 = vsyncadd [#allocation6], %s634
          %s636 = smul.addr %s632, 128
          %s637 = scalar_lea.hbm %s3, %s636
          %s638 = sshll.u32 [#allocation10], 4
          %s639 = int_to_ptr.vmem [resolvable:$true] %s638
          %644 = dma.vmem_to_hbm [thread:$0]  %s639, 512, %s637, [#allocation6], 128, 128, 8
        $region64: #{tpu_custom_call.1} parent=31 // pred_fallthru
          _
        // Predicated region
        $region65: #{tpu_custom_call.1} parent=31 // pred_check
          %p645 = pneg %p125
        $region66: #{tpu_custom_call.1} parent=31 // pred_check_branch
          %647 = sbr.rel (%p645) target = $region68
        $region67: #{tpu_custom_call.1} parent=31 // pred_region
          %648 = dma.done [#allocation6], 512
        $region68: #{tpu_custom_call.1} parent=31 // pred_fallthru
          _
      $region32: #{tpu_custom_call.1} parent=5 // pred_fallthru
        _
      %p649 = scmp.le.s32.totalorder 2, %s12
      // Predicated region
      $region69: #{tpu_custom_call.1} parent=5 // pred_check
        %p650 = pneg %p649
      $region70: #{tpu_custom_call.1} parent=5 // pred_check_branch
        %652 = sbr.rel (%p650) target = $region72
      $region71: #{tpu_custom_call.1} parent=5 // pred_region
        %s653 = ssub.s32 %s12, 2
      $region72: #{tpu_custom_call.1} parent=5 // pred_fallthru
        _
    $region6: #{tpu_custom_call.1} parent=1 // loop_footer
      %s16 = sadd.s32 1, %s12
    $region7: #{tpu_custom_call.1} parent=1 // loop_footer_branch
      %11 = sbr.rel target = $region3
    $region8: #{tpu_custom_call.1} parent=1 // loop_exit
      _
    %654 = vsyncpa [#allocation5], 1
    %s655 = scalar_lea.sflag [#allocation5], 1
    %656 = vsyncpa %s655, 1
    %657 = vsyncpa [#allocation8], 1
    %658 = vsyncpa [#allocation6], 1
    %s659 = scalar_lea.sflag [#allocation6], 1
    %660 = vsyncpa %s659, 1

</llo_original>
